<compile_context>
chip_gen: v6e
topology: v6e:2x2x1
jax: 0.10.0
libtpu: 0.0.40
codegen_flags: <defaults>
</compile_context>

<pallas_src>
import math
import numpy as np
import jax
import jax.numpy as jnp
from jax.experimental import pallas as pl
from jax.experimental.pallas import tpu as pltpu


# ---------------------------------------------------------------------------
# kaiser_sinc_filter1d (fixed buffer in the PyTorch module, not a parameter)
# ---------------------------------------------------------------------------
def kaiser_sinc_filter1d(cutoff, half_width, kernel_size):
    even = kernel_size % 2 == 0
    half_size = kernel_size // 2
    delta_f = 4.0 * half_width
    A = 2.285 * (half_size - 1) * math.pi * delta_f + 7.95
    if A > 50.0:
        beta = 0.1102 * (A - 8.7)
    elif A >= 21.0:
        beta = 0.5842 * (A - 21.0) ** 0.4 + 0.07886 * (A - 21.0)
    else:
        beta = 0.0
    window = np.kaiser(kernel_size, beta)
    if even:
        time = np.arange(-half_size, half_size) + 0.5
    else:
        time = np.arange(kernel_size) - half_size
    if cutoff == 0:
        filt = np.zeros_like(time)
    else:
        filt = 2.0 * cutoff * window * np.sinc(2.0 * cutoff * time)
        filt = filt / filt.sum()
    return filt.astype(np.float32)


# ---------------------------------------------------------------------------
# Fused up(2x, polyphase) + Snake + down(2x, polyphase) kernel
# ---------------------------------------------------------------------------
def _make_fused_kernel(AE, AO, BE, BO, R_TILE, T_TILE, WIN, LS_W, T_true, n_t):
    # Right-boundary (replicate-pad of the upsampled signal) patches: the
    # clamp at s-index 2T-1 can touch the last tile and (if the last tile
    # holds only 1-2 valid outputs) the one before it.  All slice bounds are
    # Python ints, so each patch is a static-slice write guarded by pl.when.
    right_patches = []
    for tk in range(max(0, n_t - 2), n_t):
        jr = T_true + 2 - tk * T_TILE        # column holding s_even(T-1)+1 region
        if 3 <= jr <= T_TILE + 4:
            right_patches.append((tk, jr))

    def kernel(a_ref, ia_ref, x_ref, o_ref, se_ref, so_ref):
        ti = pl.program_id(1)
        t0 = pl.multiple_of(ti * T_TILE, 128)

        # (R_TILE, WIN) window of the replicate-padded input (11-sample halo).
        w = x_ref[:, pl.ds(t0, WIN)].astype(jnp.float32)

        # ---- polyphase transposed-conv upsample: 6 taps per output phase ----
        se = jnp.zeros((R_TILE, LS_W), jnp.float32)   # even output phase s[2m]
        so = jnp.zeros((R_TILE, LS_W), jnp.float32)   # odd  output phase s[2m+1]
        for d in range(6):
            wd = w[:, d:d + LS_W]
            se = se + AE[d] * wd
            so = so + AO[d] * wd

        # ---- Snake activation (inv_alpha precomputed -> multiply, no divide) --
        a = a_ref[...].astype(jnp.float32)            # (R_TILE, 1)
        ia = ia_ref[...].astype(jnp.float32)          # (R_TILE, 1)
        se_ref[...] = se + jnp.sin(a * se) ** 2 * ia
        so_ref[...] = so + jnp.sin(a * so) ** 2 * ia

        # ---- replicate-pad boundary patches for the downsample --------------
        @pl.when(ti == 0)
        def _():
            se0 = se_ref[:, 2:3]                      # s_even(0) == s[0]
            se_ref[:, 0:2] = jnp.broadcast_to(se0, (R_TILE, 2))
            so_ref[:, 0:3] = jnp.broadcast_to(se0, (R_TILE, 3))

        for tk, jr in right_patches:
            @pl.when(ti == tk)
            def _(jr=jr):
                so_last = so_ref[:, jr:jr + 1]        # s_odd(T-1) == s[2T-1]
                se_ref[:, jr:] = jnp.broadcast_to(so_last, (R_TILE, LS_W - jr))
                so_ref[:, jr + 1:] = jnp.broadcast_to(
                    so_last, (R_TILE, LS_W - jr - 1))

        # ---- polyphase stride-2 low-pass downsample --------------------------
        acc = jnp.zeros((R_TILE, T_TILE), jnp.float32)
        for q in range(6):
            acc = acc + BE[q] * se_ref[:, q:q + T_TILE]
            acc = acc + BO[q] * so_ref[:, q:q + T_TILE]
        o_ref[...] = acc.astype(o_ref.dtype)          # lane-dense full-tile store

    return kernel


# ---------------------------------------------------------------------------
# Wrapper: Activation1d forward
# ---------------------------------------------------------------------------
def activation1d_forward(x, alpha, up_ratio=2, down_ratio=2,
                         up_kernel_size=12, down_kernel_size=12):
    assert up_ratio == 2 and down_ratio == 2, "polyphase split hard-coded for ratio 2"
    assert up_kernel_size == 12 and down_kernel_size == 12
    B, C, T = x.shape
    dtype = x.dtype

    w_up = kaiser_sinc_filter1d(0.5 / up_ratio, 0.6 / up_ratio, up_kernel_size)
    w_dn = kaiser_sinc_filter1d(0.5 / down_ratio, 0.6 / down_ratio, down_kernel_size)

    # ratio folded into the upsample taps; per-phase tap tables (trace-time consts)
    AE = [float(up_ratio * w_up[11 - 2 * d]) for d in range(6)]   # even out phase
    AO = [float(up_ratio * w_up[10 - 2 * d]) for d in range(6)]   # odd  out phase
    BE = [float(w_dn[2 * q + 1]) for q in range(6)]               # hits even phase
    BO = [float(w_dn[2 * q]) for q in range(6)]                   # hits odd  phase

    # ---- row packing: fold B and C into the sublane dimension ---------------
    N = B * C
    R_TILE = 8
    R_pad = -(-N // R_TILE) * R_TILE
    # ---- time tiling (multiples of 128 lanes) --------------------------------
    T_TILE = min(512, -(-T // 128) * 128)
    n_t = -(-T // T_TILE)
    T_out = n_t * T_TILE
    WIN = T_TILE + 16          # input window per tile (needs T_TILE + 13)
    LS_W = T_TILE + 8          # per-phase intermediate width (needs T_TILE + 5)
    X_LEN = T_out + 16         # padded input length so every window is in-bounds

    x_rows = x.reshape(N, T)
    # replicate pad: 5 on the left (upsample receptive field), enough on the right
    x_rows = jnp.pad(x_rows, ((0, 0), (5, X_LEN - T - 5)), mode="edge")
    if R_pad > N:
        x_rows = jnp.pad(x_rows, ((0, R_pad - N), (0, 0)))

    a_rows = jnp.tile(alpha.astype(jnp.float32).reshape(-1), B)   # (N,)
    ia_rows = 1.0 / (a_rows + 1e-9)                               # host-side reciprocal
    if R_pad > N:
        a_rows = jnp.pad(a_rows, (0, R_pad - N), constant_values=1.0)
        ia_rows = jnp.pad(ia_rows, (0, R_pad - N), constant_values=1.0)
    a_rows = a_rows.reshape(R_pad, 1)
    ia_rows = ia_rows.reshape(R_pad, 1)

    kernel = _make_fused_kernel(AE, AO, BE, BO, R_TILE, T_TILE, WIN, LS_W, T, n_t)

    y_rows = pl.pallas_call(
        kernel,
        out_shape=jax.ShapeDtypeStruct((R_pad, T_out), dtype),
        grid=(R_pad // R_TILE, n_t),
        in_specs=[
            pl.BlockSpec((R_TILE, 1), lambda r, t: (r, 0)),        # alpha
            pl.BlockSpec((R_TILE, 1), lambda r, t: (r, 0)),        # 1/(alpha+eps)
            # full (padded) time extent per row tile; index ignores t, so the
            # block stays resident across the inner time loop (one HBM read).
            pl.BlockSpec((R_TILE, X_LEN), lambda r, t: (r, 0)),
        ],
        out_specs=pl.BlockSpec((R_TILE, T_TILE), lambda r, t: (r, t)),
        scratch_shapes=[
            pltpu.VMEM((R_TILE, LS_W), jnp.float32),               # even phase of act(up(x))
            pltpu.VMEM((R_TILE, LS_W), jnp.float32),               # odd  phase of act(up(x))
        ],
        compiler_params=pltpu.CompilerParams(
            dimension_semantics=("parallel", "parallel"),
            vmem_limit_bytes=32 * 1024 * 1024,
        ),
    )(a_rows, ia_rows, x_rows)

    return y_rows[:N, :T].reshape(B, C, T)


# ---------------------------------------------------------------------------
# Pure-JAX reference (mirrors the PyTorch ops) for a correctness check
# ---------------------------------------------------------------------------
def _reference(x, alpha, up_ratio, down_ratio, up_k, down_k):
    w_up = jnp.asarray(kaiser_sinc_filter1d(0.5 / up_ratio, 0.6 / up_ratio, up_k))
    w_dn = jnp.asarray(kaiser_sinc_filter1d(0.5 / down_ratio, 0.6 / down_ratio, down_k))
    B, C, T = x.shape
    # UpSample1d: replicate pad -> depthwise conv_transpose1d(stride) -> *ratio -> crop
    pad = up_k // up_ratio - 1
    pad_left = pad * up_ratio + (up_k - up_ratio) // 2
    pad_right = pad * up_ratio + (up_k - up_ratio + 1) // 2
    xp = jnp.pad(x, ((0, 0), (0, 0), (pad, pad)), mode="edge")
    w = jnp.broadcast_to(w_up[None, None, ::-1], (C, 1, up_k))   # flipped kernel
    u = jax.lax.conv_general_dilated(
        xp, w, window_strides=(1,), padding=[(up_k - 1, up_k - 1)],
        lhs_dilation=(up_ratio,), dimension_numbers=("NCH", "OIH", "NCH"),
        feature_group_count=C, precision=jax.lax.Precision.HIGHEST)
    u = up_ratio * u
    u = u[:, :, pad_left:-pad_right]
    # Snake activation
    a = alpha[None, :, None]
    u = u + jnp.sin(a * u) ** 2 / (a + 1e-9)
    # DownSample1d: replicate pad -> depthwise conv1d(stride)
    dpl = down_k // 2 - 1
    dpr = down_k // 2
    up_pad = jnp.pad(u, ((0, 0), (0, 0), (dpl, dpr)), mode="edge")
    wd = jnp.broadcast_to(w_dn[None, None, :], (C, 1, down_k))
    y = jax.lax.conv_general_dilated(
        up_pad, wd, window_strides=(down_ratio,), padding=[(0, 0)],
        dimension_numbers=("NCH", "OIH", "NCH"), feature_group_count=C,
        precision=jax.lax.Precision.HIGHEST)
    return y


if __name__ == "__main__":
    key = jax.random.PRNGKey(0)

    # Small shape from the module spec.
    B, C, T = 2, 4, 16
    kx, _ = jax.random.split(key)
    x = jax.random.normal(kx, (B, C, T), jnp.float32)
    # Injected `activation` modeled as Snake; deterministic per-channel alpha.
    alpha = jnp.linspace(0.5, 2.0, C, dtype=jnp.float32)

    y = jax.block_until_ready(activation1d_forward(x, alpha))
    y_ref = _reference(x, alpha, 2, 2, 12, 12)
    np.testing.assert_allclose(np.asarray(y), np.asarray(y_ref), rtol=1e-4, atol=1e-4)
    assert y.shape == (B, C, T)

    # Second check: exercises time tiling, halos, row padding and the
    # boundary patches across two time tiles (T = 512 + 1).
    B2, C2, T2 = 2, 3, 513
    k2, k3 = jax.random.split(key)
    x2 = jax.random.normal(k2, (B2, C2, T2), jnp.float32)
    alpha2 = jnp.linspace(0.3, 1.7, C2, dtype=jnp.float32)
    y2 = jax.block_until_ready(activation1d_forward(x2, alpha2))
    y2_ref = _reference(x2, alpha2, 2, 2, 12, 12)
    np.testing.assert_allclose(np.asarray(y2), np.asarray(y2_ref), rtol=1e-4, atol=1e-4)
    assert y2.shape == (B2, C2, T2)

    print("KERNEL_OK")
</pallas_src>

<mosaic_0001>
module attributes {stable_mosaic.version = 11 : i64} {
  func.func @kernel(%arg0: i32, %arg1: i32, %arg2: memref<8x1xf32, #tpu.memory_space<vmem>>, %arg3: memref<8x1xf32, #tpu.memory_space<vmem>>, %arg4: memref<8x144xf32, #tpu.memory_space<vmem>>, %arg5: memref<8x128xf32, #tpu.memory_space<vmem>>, %arg6: memref<8x136xf32, #tpu.memory_space<vmem>>, %arg7: memref<8x136xf32, #tpu.memory_space<vmem>>) attributes {dimension_semantics = [#tpu.dimension_semantics<parallel>, #tpu.dimension_semantics<parallel>], iteration_bounds = array<i64: 1, 1>, scalar_prefetch = 0 : i64, scratch_operands = 2 : i64, tpu.core_type = #tpu.core_type<tc>, window_params = [{transform_indices = @transform_0, window_bounds = array<i64: 8, 1>}, {transform_indices = @transform_1, window_bounds = array<i64: 8, 1>}, {transform_indices = @transform_2, window_bounds = array<i64: 8, 144>}, {transform_indices = @transform_3, window_bounds = array<i64: 8, 128>}]} {
    %c128_i32 = arith.constant 128 : i32
    %0 = arith.muli %arg1, %c128_i32 : i32
    %1 = tpu.assume_multiple %0, 128 : i32
    %c0 = arith.constant 0 : index
    %2 = arith.index_cast %1 : i32 to index
    %3 = vector.load %arg4[%c0, %2] : memref<8x144xf32, #tpu.memory_space<vmem>>, vector<8x144xf32>
    %cst = arith.constant 0.000000e+00 : f32
    %4 = vector.broadcast %cst : f32 to vector<8x136xf32>
    %cst_0 = arith.constant 0.000000e+00 : f32
    %5 = vector.broadcast %cst_0 : f32 to vector<8x136xf32>
    %6 = vector.extract_strided_slice %3 {offsets = [0, 0], sizes = [8, 136], strides = [1, 1]} : vector<8x144xf32> to vector<8x136xf32>
    %cst_1 = arith.constant 0.00405793311 : f32
    %7 = vector.broadcast %cst_1 : f32 to vector<8x136xf32>
    %8 = arith.mulf %7, %6 : vector<8x136xf32>
    %9 = arith.addf %4, %8 : vector<8x136xf32>
    %cst_2 = arith.constant 0.0187789276 : f32
    %10 = vector.broadcast %cst_2 : f32 to vector<8x136xf32>
    %11 = arith.mulf %10, %6 : vector<8x136xf32>
    %12 = arith.addf %5, %11 : vector<8x136xf32>
    %13 = vector.extract_strided_slice %3 {offsets = [0, 1], sizes = [8, 136], strides = [1, 1]} : vector<8x144xf32> to vector<8x136xf32>
    %cst_3 = arith.constant -0.0510869287 : f32
    %14 = vector.broadcast %cst_3 : f32 to vector<8x136xf32>
    %15 = arith.mulf %14, %13 : vector<8x136xf32>
    %16 = arith.addf %9, %15 : vector<8x136xf32>
    %cst_4 = arith.constant -0.115314752 : f32
    %17 = vector.broadcast %cst_4 : f32 to vector<8x136xf32>
    %18 = arith.mulf %17, %13 : vector<8x136xf32>
    %19 = arith.addf %12, %18 : vector<8x136xf32>
    %20 = vector.extract_strided_slice %3 {offsets = [0, 2], sizes = [8, 136], strides = [1, 1]} : vector<8x144xf32> to vector<8x136xf32>
    %cst_5 = arith.constant 0.257145226 : f32
    %21 = vector.broadcast %cst_5 : f32 to vector<8x136xf32>
    %22 = arith.mulf %21, %20 : vector<8x136xf32>
    %23 = arith.addf %16, %22 : vector<8x136xf32>
    %cst_6 = arith.constant 0.886419594 : f32
    %24 = vector.broadcast %cst_6 : f32 to vector<8x136xf32>
    %25 = arith.mulf %24, %20 : vector<8x136xf32>
    %26 = arith.addf %19, %25 : vector<8x136xf32>
    %27 = vector.extract_strided_slice %3 {offsets = [0, 3], sizes = [8, 136], strides = [1, 1]} : vector<8x144xf32> to vector<8x136xf32>
    %cst_7 = arith.constant 0.886419594 : f32
    %28 = vector.broadcast %cst_7 : f32 to vector<8x136xf32>
    %29 = arith.mulf %28, %27 : vector<8x136xf32>
    %30 = arith.addf %23, %29 : vector<8x136xf32>
    %cst_8 = arith.constant 0.257145226 : f32
    %31 = vector.broadcast %cst_8 : f32 to vector<8x136xf32>
    %32 = arith.mulf %31, %27 : vector<8x136xf32>
    %33 = arith.addf %26, %32 : vector<8x136xf32>
    %34 = vector.extract_strided_slice %3 {offsets = [0, 4], sizes = [8, 136], strides = [1, 1]} : vector<8x144xf32> to vector<8x136xf32>
    %cst_9 = arith.constant -0.115314752 : f32
    %35 = vector.broadcast %cst_9 : f32 to vector<8x136xf32>
    %36 = arith.mulf %35, %34 : vector<8x136xf32>
    %37 = arith.addf %30, %36 : vector<8x136xf32>
    %cst_10 = arith.constant -0.0510869287 : f32
    %38 = vector.broadcast %cst_10 : f32 to vector<8x136xf32>
    %39 = arith.mulf %38, %34 : vector<8x136xf32>
    %40 = arith.addf %33, %39 : vector<8x136xf32>
    %41 = vector.extract_strided_slice %3 {offsets = [0, 5], sizes = [8, 136], strides = [1, 1]} : vector<8x144xf32> to vector<8x136xf32>
    %cst_11 = arith.constant 0.0187789276 : f32
    %42 = vector.broadcast %cst_11 : f32 to vector<8x136xf32>
    %43 = arith.mulf %42, %41 : vector<8x136xf32>
    %44 = arith.addf %37, %43 : vector<8x136xf32>
    %cst_12 = arith.constant 0.00405793311 : f32
    %45 = vector.broadcast %cst_12 : f32 to vector<8x136xf32>
    %46 = arith.mulf %45, %41 : vector<8x136xf32>
    %47 = arith.addf %40, %46 : vector<8x136xf32>
    %c0_13 = arith.constant 0 : index
    %c0_14 = arith.constant 0 : index
    %48 = vector.load %arg2[%c0_13, %c0_14] : memref<8x1xf32, #tpu.memory_space<vmem>>, vector<8x1xf32>
    %c0_15 = arith.constant 0 : index
    %c0_16 = arith.constant 0 : index
    %49 = vector.load %arg3[%c0_15, %c0_16] : memref<8x1xf32, #tpu.memory_space<vmem>>, vector<8x1xf32>
    %50 = vector.broadcast %48 : vector<8x1xf32> to vector<8x136xf32>
    %51 = arith.mulf %50, %44 : vector<8x136xf32>
    %52 = math.sin %51 : vector<8x136xf32>
    %53 = arith.mulf %52, %52 : vector<8x136xf32>
    %54 = vector.broadcast %49 : vector<8x1xf32> to vector<8x136xf32>
    %55 = arith.mulf %53, %54 : vector<8x136xf32>
    %56 = arith.addf %44, %55 : vector<8x136xf32>
    %c0_17 = arith.constant 0 : index
    %c0_18 = arith.constant 0 : index
    %57 = vector.load %arg6[%c0_17, %c0_18] : memref<8x136xf32, #tpu.memory_space<vmem>>, vector<8x136xf32>
    tpu.vector_store %arg6[%c0_17, %c0_18], %56 {strides = array<i32>} : memref<8x136xf32, #tpu.memory_space<vmem>>, vector<8x136xf32>,
    %58 = vector.broadcast %48 : vector<8x1xf32> to vector<8x136xf32>
    %59 = arith.mulf %58, %47 : vector<8x136xf32>
    %60 = math.sin %59 : vector<8x136xf32>
    %61 = arith.mulf %60, %60 : vector<8x136xf32>
    %62 = vector.broadcast %49 : vector<8x1xf32> to vector<8x136xf32>
    %63 = arith.mulf %61, %62 : vector<8x136xf32>
    %64 = arith.addf %47, %63 : vector<8x136xf32>
    %c0_19 = arith.constant 0 : index
    %c0_20 = arith.constant 0 : index
    %65 = vector.load %arg7[%c0_19, %c0_20] : memref<8x136xf32, #tpu.memory_space<vmem>>, vector<8x136xf32>
    tpu.vector_store %arg7[%c0_19, %c0_20], %64 {strides = array<i32>} : memref<8x136xf32, #tpu.memory_space<vmem>>, vector<8x136xf32>,
    %c0_i32 = arith.constant 0 : i32
    %66 = arith.cmpi eq, %arg1, %c0_i32 : i32
    %67 = arith.extui %66 : i1 to i32
    %c0_i32_21 = arith.constant 0 : i32
    %68 = arith.cmpi ne, %67, %c0_i32_21 : i32
    scf.if %68 {
      %c0_58 = arith.constant 0 : index
      %c2_59 = arith.constant 2 : index
      %122 = vector.load %arg6[%c0_58, %c2_59] : memref<8x136xf32, #tpu.memory_space<vmem>>, vector<8x1xf32>
      %123 = vector.shape_cast %122 : vector<8x1xf32> to vector<8x1xf32>
      %124 = vector.broadcast %123 : vector<8x1xf32> to vector<8x2xf32>
      %c0_60 = arith.constant 0 : index
      %c0_61 = arith.constant 0 : index
      %125 = vector.load %arg6[%c0_60, %c0_61] : memref<8x136xf32, #tpu.memory_space<vmem>>, vector<8x2xf32>
      tpu.vector_store %arg6[%c0_60, %c0_61], %124 {strides = array<i32>} : memref<8x136xf32, #tpu.memory_space<vmem>>, vector<8x2xf32>,
      %126 = vector.shape_cast %122 : vector<8x1xf32> to vector<8x1xf32>
      %127 = vector.broadcast %126 : vector<8x1xf32> to vector<8x3xf32>
      %c0_62 = arith.constant 0 : index
      %c0_63 = arith.constant 0 : index
      %128 = vector.load %arg7[%c0_62, %c0_63] : memref<8x136xf32, #tpu.memory_space<vmem>>, vector<8x3xf32>
      tpu.vector_store %arg7[%c0_62, %c0_63], %127 {strides = array<i32>} : memref<8x136xf32, #tpu.memory_space<vmem>>, vector<8x3xf32>,
    } else {
    }
    %c0_i32_22 = arith.constant 0 : i32
    %69 = arith.cmpi eq, %arg1, %c0_i32_22 : i32
    %70 = arith.extui %69 : i1 to i32
    %c0_i32_23 = arith.constant 0 : i32
    %71 = arith.cmpi ne, %70, %c0_i32_23 : i32
    scf.if %71 {
      %c0_58 = arith.constant 0 : index
      %c18 = arith.constant 18 : index
      %122 = vector.load %arg7[%c0_58, %c18] : memref<8x136xf32, #tpu.memory_space<vmem>>, vector<8x1xf32>
      %123 = vector.shape_cast %122 : vector<8x1xf32> to vector<8x1xf32>
      %124 = vector.broadcast %123 : vector<8x1xf32> to vector<8x118xf32>
      %c0_59 = arith.constant 0 : index
      %c18_60 = arith.constant 18 : index
      %125 = vector.load %arg6[%c0_59, %c18_60] : memref<8x136xf32, #tpu.memory_space<vmem>>, vector<8x118xf32>
      tpu.vector_store %arg6[%c0_59, %c18_60], %124 {strides = array<i32>} : memref<8x136xf32, #tpu.memory_space<vmem>>, vector<8x118xf32>,
      %126 = vector.shape_cast %122 : vector<8x1xf32> to vector<8x1xf32>
      %127 = vector.broadcast %126 : vector<8x1xf32> to vector<8x117xf32>
      %c0_61 = arith.constant 0 : index
      %c19 = arith.constant 19 : index
      %128 = vector.load %arg7[%c0_61, %c19] : memref<8x136xf32, #tpu.memory_space<vmem>>, vector<8x117xf32>
      tpu.vector_store %arg7[%c0_61, %c19], %127 {strides = array<i32>} : memref<8x136xf32, #tpu.memory_space<vmem>>, vector<8x117xf32>,
    } else {
    }
    %cst_24 = arith.constant 0.000000e+00 : f32
    %72 = vector.broadcast %cst_24 : f32 to vector<8x128xf32>
    %c0_25 = arith.constant 0 : index
    %c0_26 = arith.constant 0 : index
    %73 = vector.load %arg6[%c0_25, %c0_26] : memref<8x136xf32, #tpu.memory_space<vmem>>, vector<8x128xf32>
    %cst_27 = arith.constant 0.00938946381 : f32
    %74 = vector.broadcast %cst_27 : f32 to vector<8x128xf32>
    %75 = arith.mulf %74, %73 : vector<8x128xf32>
    %76 = arith.addf %72, %75 : vector<8x128xf32>
    %c0_28 = arith.constant 0 : index
    %c0_29 = arith.constant 0 : index
    %77 = vector.load %arg7[%c0_28, %c0_29] : memref<8x136xf32, #tpu.memory_space<vmem>>, vector<8x128xf32>
    %cst_30 = arith.constant 0.00202896656 : f32
    %78 = vector.broadcast %cst_30 : f32 to vector<8x128xf32>
    %79 = arith.mulf %78, %77 : vector<8x128xf32>
    %80 = arith.addf %76, %79 : vector<8x128xf32>
    %c0_31 = arith.constant 0 : index
    %c1 = arith.constant 1 : index
    %81 = vector.load %arg6[%c0_31, %c1] : memref<8x136xf32, #tpu.memory_space<vmem>>, vector<8x128xf32>
    %cst_32 = arith.constant -0.0576573759 : f32
    %82 = vector.broadcast %cst_32 : f32 to vector<8x128xf32>
    %83 = arith.mulf %82, %81 : vector<8x128xf32>
    %84 = arith.addf %80, %83 : vector<8x128xf32>
    %c0_33 = arith.constant 0 : index
    %c1_34 = arith.constant 1 : index
    %85 = vector.load %arg7[%c0_33, %c1_34] : memref<8x136xf32, #tpu.memory_space<vmem>>, vector<8x128xf32>
    %cst_35 = arith.constant -0.0255434643 : f32
    %86 = vector.broadcast %cst_35 : f32 to vector<8x128xf32>
    %87 = arith.mulf %86, %85 : vector<8x128xf32>
    %88 = arith.addf %84, %87 : vector<8x128xf32>
    %c0_36 = arith.constant 0 : index
    %c2 = arith.constant 2 : index
    %89 = vector.load %arg6[%c0_36, %c2] : memref<8x136xf32, #tpu.memory_space<vmem>>, vector<8x128xf32>
    %cst_37 = arith.constant 0.443209797 : f32
    %90 = vector.broadcast %cst_37 : f32 to vector<8x128xf32>
    %91 = arith.mulf %90, %89 : vector<8x128xf32>
    %92 = arith.addf %88, %91 : vector<8x128xf32>
    %c0_38 = arith.constant 0 : index
    %c2_39 = arith.constant 2 : index
    %93 = vector.load %arg7[%c0_38, %c2_39] : memref<8x136xf32, #tpu.memory_space<vmem>>, vector<8x128xf32>
    %cst_40 = arith.constant 0.128572613 : f32
    %94 = vector.broadcast %cst_40 : f32 to vector<8x128xf32>
    %95 = arith.mulf %94, %93 : vector<8x128xf32>
    %96 = arith.addf %92, %95 : vector<8x128xf32>
    %c0_41 = arith.constant 0 : index
    %c3 = arith.constant 3 : index
    %97 = vector.load %arg6[%c0_41, %c3] : memref<8x136xf32, #tpu.memory_space<vmem>>, vector<8x128xf32>
    %cst_42 = arith.constant 0.128572613 : f32
    %98 = vector.broadcast %cst_42 : f32 to vector<8x128xf32>
    %99 = arith.mulf %98, %97 : vector<8x128xf32>
    %100 = arith.addf %96, %99 : vector<8x128xf32>
    %c0_43 = arith.constant 0 : index
    %c3_44 = arith.constant 3 : index
    %101 = vector.load %arg7[%c0_43, %c3_44] : memref<8x136xf32, #tpu.memory_space<vmem>>, vector<8x128xf32>
    %cst_45 = arith.constant 0.443209797 : f32
    %102 = vector.broadcast %cst_45 : f32 to vector<8x128xf32>
    %103 = arith.mulf %102, %101 : vector<8x128xf32>
    %104 = arith.addf %100, %103 : vector<8x128xf32>
    %c0_46 = arith.constant 0 : index
    %c4 = arith.constant 4 : index
    %105 = vector.load %arg6[%c0_46, %c4] : memref<8x136xf32, #tpu.memory_space<vmem>>, vector<8x128xf32>
    %cst_47 = arith.constant -0.0255434643 : f32
    %106 = vector.broadcast %cst_47 : f32 to vector<8x128xf32>
    %107 = arith.mulf %106, %105 : vector<8x128xf32>
    %108 = arith.addf %104, %107 : vector<8x128xf32>
    %c0_48 = arith.constant 0 : index
    %c4_49 = arith.constant 4 : index
    %109 = vector.load %arg7[%c0_48, %c4_49] : memref<8x136xf32, #tpu.memory_space<vmem>>, vector<8x128xf32>
    %cst_50 = arith.constant -0.0576573759 : f32
    %110 = vector.broadcast %cst_50 : f32 to vector<8x128xf32>
    %111 = arith.mulf %110, %109 : vector<8x128xf32>
    %112 = arith.addf %108, %111 : vector<8x128xf32>
    %c0_51 = arith.constant 0 : index
    %c5 = arith.constant 5 : index
    %113 = vector.load %arg6[%c0_51, %c5] : memref<8x136xf32, #tpu.memory_space<vmem>>, vector<8x128xf32>
    %cst_52 = arith.constant 0.00202896656 : f32
    %114 = vector.broadcast %cst_52 : f32 to vector<8x128xf32>
    %115 = arith.mulf %114, %113 : vector<8x128xf32>
    %116 = arith.addf %112, %115 : vector<8x128xf32>
    %c0_53 = arith.constant 0 : index
    %c5_54 = arith.constant 5 : index
    %117 = vector.load %arg7[%c0_53, %c5_54] : memref<8x136xf32, #tpu.memory_space<vmem>>, vector<8x128xf32>
    %cst_55 = arith.constant 0.00938946381 : f32
    %118 = vector.broadcast %cst_55 : f32 to vector<8x128xf32>
    %119 = arith.mulf %118, %117 : vector<8x128xf32>
    %120 = arith.addf %116, %119 : vector<8x128xf32>
    %c0_56 = arith.constant 0 : index
    %c0_57 = arith.constant 0 : index
    %121 = vector.load %arg5[%c0_56, %c0_57] : memref<8x128xf32, #tpu.memory_space<vmem>>, vector<8x128xf32>
    tpu.vector_store %arg5[%c0_56, %c0_57], %120 {strides = array<i32>} : memref<8x128xf32, #tpu.memory_space<vmem>>, vector<8x128xf32>,
    return
  }
  func.func @transform_0(%arg0: i32, %arg1: i32) -> (i32, i32) {
    %c0_i32 = arith.constant 0 : i32
    %c0_i32_0 = arith.constant 0 : i32
    return %arg0, %c0_i32 : i32, i32
  }
  func.func @transform_1(%arg0: i32, %arg1: i32) -> (i32, i32) {
    %c0_i32 = arith.constant 0 : i32
    %c0_i32_0 = arith.constant 0 : i32
    return %arg0, %c0_i32 : i32, i32
  }
  func.func @transform_2(%arg0: i32, %arg1: i32) -> (i32, i32) {
    %c0_i32 = arith.constant 0 : i32
    %c0_i32_0 = arith.constant 0 : i32
    return %arg0, %c0_i32 : i32, i32
  }
  func.func @transform_3(%arg0: i32, %arg1: i32) -> (i32, i32) {
    %c0_i32 = arith.constant 0 : i32
    return %arg0, %arg1 : i32, i32
  }
}

</mosaic_0001>

<llo_original>
// kernel: tpu_custom_call.1
$region0: #{tpu_custom_call.1}
  #allocation0 [shape = 'u32[]', space=smem, size = 0x4, offset = 0x4, fixed_abs, tag = 'smem constant byte address 0x4 - core index']
  #allocation1 [shape = 'u32[144,128]{1,0:T(1,128)}', space=vmem, size = 0x12000, scoped, tag = 'internal scratch']
  #allocation2 [shape = 'f32[8,136]{1,0:T(8,128)}', space=vmem, size = 0x2000, scoped, tag = 'scratch operand']
  #allocation3 [shape = 'f32[8,136]{1,0:T(8,128)}', space=vmem, size = 0x2000, scoped, tag = 'scratch operand']
  %s0 = inlined_call_operand.vmem [shape: f32[8,1], index: 0, kind: input, shape index: {}]
  %s1 = inlined_call_operand.vmem [shape: f32[8,1], index: 1, kind: input, shape index: {}]
  %s2 = inlined_call_operand.vmem [shape: f32[8,144], index: 2, kind: input, shape index: {}]
  %s3 = inlined_call_operand.hbm [shape: f32[8,128], index: 3, kind: output, shape index: {}]
  %s4 = sld [smem:[#allocation0]]
  $region26: #{tpu_custom_call.1} parent=0
    _
  %s6 = ssub.s32 1, %s4
  %s7 = scalar_select 0, %s6, %s4
  $region1: #{tpu_custom_call.1} parent=0
    #allocation4 [shape = 'u8[4096]{0}', space=vmem, size = 0x1000, scoped, tag = 'output window, operand 0, single buffered']
    #allocation5 [shape = 's32[1]{0}', space=sflag, size = 0x4, scoped, tag = 'scoped memory for tpu_custom_call.1']
    %8 = vsyncpa [#allocation5], 0
    // Predicated region
    $region2: #{tpu_custom_call.1} parent=1 // pred_check
      _
    $region3: #{tpu_custom_call.1} parent=1 // pred_check_branch
      %10 = sbr.rel (0) target = $region5
    $region4: #{tpu_custom_call.1} parent=1 // pred_region
      _
    $region5: #{tpu_custom_call.1} parent=1 // pred_fallthru
      _
    // Predicated region
    $region6: #{tpu_custom_call.1} parent=1 // pred_check
      _
    $region7: #{tpu_custom_call.1} parent=1 // pred_check_branch
      %12 = sbr.rel (0) target = $region9
    $region8: #{tpu_custom_call.1} parent=1 // pred_region
      _
    $region9: #{tpu_custom_call.1} parent=1 // pred_fallthru
      _
    // Predicated region
    $region10: #{tpu_custom_call.1} parent=1 // pred_check
      _
    $region11: #{tpu_custom_call.1} parent=1 // pred_check_branch
      %14 = sbr.rel (0) target = $region13
    $region12: #{tpu_custom_call.1} parent=1 // pred_region
      _
    $region13: #{tpu_custom_call.1} parent=1 // pred_fallthru
      _
    %s15 = smul.u32 0, 128
    %s16 = sshra.s32 %s15, 7
    %s17 = sand.u32 %s15, 127
    %s18 = smul.addr %s16, 8
    %s19 = scalar_lea.vmem %s2, %s18
    %v20 = vld [vmem:[%s19] sm:$0xff]
    %v21 = vld [vmem:[%s19 + $0x8] sm:$0xff]
    %v22 = vmul.f32 %v20, 0.004057933
    %v23 = vmul.f32 %v21, 0.004057933
    %v24 = vadd.f32 %v22, 0.0
    %v25 = vadd.f32 %v23, 0.0
    %v26 = vmul.f32 %v20, 0.018778928
    %v27 = vmul.f32 %v21, 0.018778928
    %v28 = vadd.f32 %v26, 0.0
    %v29 = vadd.f32 %v27, 0.0
    %v30 = vmul.f32 %v20, -0.05108693
    %v31 = vmul.f32 %v21, -0.05108693
    %34 = vrot.lane.b32.xlu0 %v30, 127
    %v35 = vpop.permute.xlu0 %34
    %36 = vrot.lane.b32.xlu0 %v31, 127
    %v37 = vpop.permute.xlu0 %36
    %vm38 = vcmask 1039360
    %v39 = vsel %vm38, %v35, %v37
    %v42 = vadd.f32 %v24, %v39
    %v43 = vadd.f32 %v25, %v37
    %v44 = vmul.f32 %v20, -0.11531475
    %v45 = vmul.f32 %v21, -0.11531475
    %48 = vrot.lane.b32.xlu0 %v44, 127
    %v49 = vpop.permute.xlu0 %48
    %50 = vrot.lane.b32.xlu0 %v45, 127
    %v51 = vpop.permute.xlu0 %50
    %v52 = vsel %vm38, %v49, %v51
    %v55 = vadd.f32 %v28, %v52
    %v56 = vadd.f32 %v29, %v51
    %v57 = vmul.f32 %v20, 0.25714523
    %v58 = vmul.f32 %v21, 0.25714523
    %61 = vrot.lane.b32.xlu0 %v57, 126
    %v62 = vpop.permute.xlu0 %61
    %63 = vrot.lane.b32.xlu0 %v58, 126
    %v64 = vpop.permute.xlu0 %63
    %vm65 = vcmask 1031168
    %v66 = vsel %vm65, %v62, %v64
    %v69 = vadd.f32 %v42, %v66
    %v70 = vadd.f32 %v43, %v64
    %v71 = vmul.f32 %v20, 0.8864196
    %v72 = vmul.f32 %v21, 0.8864196
    %75 = vrot.lane.b32.xlu0 %v71, 126
    %v76 = vpop.permute.xlu0 %75
    %77 = vrot.lane.b32.xlu0 %v72, 126
    %v78 = vpop.permute.xlu0 %77
    %v79 = vsel %vm65, %v76, %v78
    %v82 = vadd.f32 %v55, %v79
    %v83 = vadd.f32 %v56, %v78
    %84 = vrot.lane.b32.xlu0 %v71, 125
    %v85 = vpop.permute.xlu0 %84
    %86 = vrot.lane.b32.xlu0 %v72, 125
    %v87 = vpop.permute.xlu0 %86
    %vm88 = vcmask 1022976
    %v89 = vsel %vm88, %v85, %v87
    %v92 = vadd.f32 %v69, %v89
    %v93 = vadd.f32 %v70, %v87
    %94 = vrot.lane.b32.xlu0 %v57, 125
    %v95 = vpop.permute.xlu0 %94
    %96 = vrot.lane.b32.xlu0 %v58, 125
    %v97 = vpop.permute.xlu0 %96
    %v98 = vsel %vm88, %v95, %v97
    %v101 = vadd.f32 %v82, %v98
    %v102 = vadd.f32 %v83, %v97
    %103 = vrot.lane.b32.xlu0 %v44, 124
    %v104 = vpop.permute.xlu0 %103
    %105 = vrot.lane.b32.xlu0 %v45, 124
    %v106 = vpop.permute.xlu0 %105
    %vm107 = vcmask 1014784
    %v108 = vsel %vm107, %v104, %v106
    %v111 = vadd.f32 %v92, %v108
    %v112 = vadd.f32 %v93, %v106
    %113 = vrot.lane.b32.xlu0 %v30, 124
    %v114 = vpop.permute.xlu0 %113
    %115 = vrot.lane.b32.xlu0 %v31, 124
    %v116 = vpop.permute.xlu0 %115
    %v117 = vsel %vm107, %v114, %v116
    %v120 = vadd.f32 %v101, %v117
    %v121 = vadd.f32 %v102, %v116
    %124 = vrot.lane.b32.xlu0 %v26, 123
    %v125 = vpop.permute.xlu0 %124
    %126 = vrot.lane.b32.xlu0 %v27, 123
    %v127 = vpop.permute.xlu0 %126
    %vm128 = vcmask 1006592
    %v129 = vsel %vm128, %v125, %v127
    %v132 = vadd.f32 %v111, %v129
    %v133 = vadd.f32 %v112, %v127
    %136 = vrot.lane.b32.xlu0 %v22, 123
    %v137 = vpop.permute.xlu0 %136
    %138 = vrot.lane.b32.xlu0 %v23, 123
    %v139 = vpop.permute.xlu0 %138
    %v140 = vsel %vm128, %v137, %v139
    %v143 = vadd.f32 %v120, %v140
    %v144 = vadd.f32 %v121, %v139
    %v145 = vld [vmem:[%s0] sm:$0xff]
    %v146 = vld [vmem:[%s1] sm:$0xff]
    %148 = vset.pattern.permute.xlu0 0
    %149 = vperm.xlu0 %148, %v145
    %v150 = vpop.permute.xlu0 %149
    %v152 = vmul.f32 %v150, %v132
    %v153 = vmul.f32 %v150, %v133
    %v154 = vand.u32 2147483647, %v152
    %vm155 = vcmp.le.f32.partialorder %v154, 0.7853982
    %vm156 = vcmp.lt.s32.totalorder %v152, 0
    %v157 = vand.u32 %v152, 2139095040
    %v158 = vshrl.u32 %v157, 23
    %v159 = vsub.s32 %v158, 127
    %v160 = vand.u32 2147483647, %v152
    %v161 = vand.u32 %v160, 8388607
    %v162 = vor.u32 %v161, 8388608
    %v163 = vsub.s32 0, %v162
    %v164 = vadd.s32 %v159, 1
    %vm165 = vcmp.gt.s32.totalorder %v164, 0
    %v166 = vsel %vm165, %v164, 0
    %v167 = vshrl.u32 %v166, 5
    %v168 = vand.u32 %v166, 31
    %v169 = vsub.s32 32, %v168
    %v170 = vshrl.u32 683565275, %v169
    %v171 = vshll.u32 683565275, %v168
    %v172 = vshrl.u32 2475754826, %v169
    %v173 = vor.u32 %v171, %v172
    %v174 = vshll.u32 2475754826, %v168
    %v175 = vshrl.u32 2131351028, %v169
    %v176 = vor.u32 %v174, %v175
    %v177 = vshll.u32 2131351028, %v168
    %v178 = vshrl.u32 2102212464, %v169
    %v179 = vor.u32 %v177, %v178
    %v180 = vshll.u32 2102212464, %v168
    %v181 = vshrl.u32 920167782, %v169
    %v182 = vor.u32 %v180, %v181
    %v183 = vshll.u32 920167782, %v168
    %v184 = vshrl.u32 1326507024, %v169
    %v185 = vor.u32 %v183, %v184
    %vm186 = vcmp.lt.s32.totalorder %v167, 1
    %vm187 = vcmp.lt.s32.totalorder %v167, 2
    %vm188 = vcmp.lt.s32.totalorder %v167, 3
    %vm189 = vcmp.lt.s32.totalorder %v167, 4
    %v190 = vsel %vm186, %v170, %v173
    %v191 = vsel %vm189, %v179, 2102212464
    %v192 = vsel %vm188, %v176, %v191
    %v193 = vsel %vm187, %v190, %v192
    %v194 = vsel %vm186, %v173, %v176
    %v195 = vsel %vm189, %v182, 920167782
    %v196 = vsel %vm188, %v179, %v195
    %v197 = vsel %vm187, %v194, %v196
    %v198 = vsel %vm186, %v176, %v179
    %v199 = vsel %vm189, %v185, 1326507024
    %v200 = vsel %vm188, %v182, %v199
    %v201 = vsel %vm187, %v198, %v200
    %v202 = vshll.u32 %v162, 8
    %v203 = vmul.u32.u64.compose %v202, %v201
    %v204 = vextract.low.u32 %v203
    %v205 = vextract.high.u32 %v203
    %v206 = vmul.u32.u64.compose %v202, %v197
    %v207 = vextract.low.u32 %v206
    %v208 = vextract.high.u32 %v206
    %v209 = vmul.u32 %v202, %v193
    %v210 = vadd.s32 %v205, %v207
    %vm211 = vc.u32 %v205, %v207
    %v212 = vadd.s32 %v208, 1
    %v213 = vsel %vm211, %v212, %v208
    %v214 = vadd.s32 %v209, %v213
    %v215 = vadd.s32 %v214, 536870912
    %v216 = vshrl.u32 %v215, 30
    %v217 = vshll.u32 %v216, 30
    %v218 = vsub.s32 %v214, %v217
    %vm219 = vcmp.lt.s32.totalorder %v218, 0
    %v220 = vsub.s32 0, %v218
    %v221 = vsel %vm219, %v220, %v218
    %v222 = vclz %v221
    %v223 = vsub.s32 %v222, 2
    %vm224 = vcmp.gt.s32.totalorder 0, %v223
    %v225 = vsel %vm224, 0, %v223
    %v226 = vsub.s32 32, %v225
    %v227 = vshll.u32 %v218, %v225
    %v228 = vshrl.u32 %v210, %v226
    %v229 = vor.u32 %v227, %v228
    %v230 = vsub.s32 4294967266, %v225
    %v231 = vadd.s32 %v230, 127
    %v232 = vshll.u32 %v231, 23
    %v233 = vor.u32 4788187, %v232
    %v234 = vand.u32 2147483647, %v233
    %v236 = vcvt.s32.f32 %v229
    %v237 = vmul.f32 %v236, %v234
    %v238 = vxor.u32 %v237, 2147483648
    %v239 = vsel %vm156, %v238, %v237
    %v240 = vsub.s32 4, %v216
    %v241 = vsel %vm156, %v240, %v216
    %v242 = vsel %vm155, %v152, %v239
    %v243 = vsel %vm155, 0, %v241
    %v244 = vcosq.f32.pop %v242
    %v245 = vsinq.f32.pop %v242
    %vm246 = vweird.f32 %v152
    %v247 = vadd.s32 %v243, 3
    %v248 = vand.u32 %v247, 3
    %vm249 = vcmp.lt.s32.totalorder %v248, 2
    %vm250 = vcmp.eq.s32.totalorder %v248, 0
    %v251 = vxor.u32 %v245, 2147483648
    %v252 = vsel %vm250, %v244, %v251
    %vm253 = vcmp.eq.s32.totalorder %v248, 2
    %v254 = vxor.u32 %v244, 2147483648
    %v255 = vsel %vm253, %v254, %v245
    %v256 = vsel %vm249, %v252, %v255
    %v257 = vsel %vm246, nan, %v256
    %v258 = vand.u32 2147483647, %v153
    %vm259 = vcmp.le.f32.partialorder %v258, 0.7853982
    %vm260 = vcmp.lt.s32.totalorder %v153, 0
    %v261 = vand.u32 %v153, 2139095040
    %v262 = vshrl.u32 %v261, 23
    %v263 = vsub.s32 %v262, 127
    %v264 = vand.u32 2147483647, %v153
    %v265 = vand.u32 %v264, 8388607
    %v266 = vor.u32 %v265, 8388608
    %v267 = vsub.s32 0, %v266
    %v268 = vadd.s32 %v263, 1
    %vm269 = vcmp.gt.s32.totalorder %v268, 0
    %v270 = vsel %vm269, %v268, 0
    %v271 = vshrl.u32 %v270, 5
    %v272 = vand.u32 %v270, 31
    %v273 = vsub.s32 32, %v272
    %v274 = vshrl.u32 683565275, %v273
    %v275 = vshll.u32 683565275, %v272
    %v276 = vshrl.u32 2475754826, %v273
    %v277 = vor.u32 %v275, %v276
    %v278 = vshll.u32 2475754826, %v272
    %v279 = vshrl.u32 2131351028, %v273
    %v280 = vor.u32 %v278, %v279
    %v281 = vshll.u32 2131351028, %v272
    %v282 = vshrl.u32 2102212464, %v273
    %v283 = vor.u32 %v281, %v282
    %v284 = vshll.u32 2102212464, %v272
    %v285 = vshrl.u32 920167782, %v273
    %v286 = vor.u32 %v284, %v285
    %v287 = vshll.u32 920167782, %v272
    %v288 = vshrl.u32 1326507024, %v273
    %v289 = vor.u32 %v287, %v288
    %vm290 = vcmp.lt.s32.totalorder %v271, 1
    %vm291 = vcmp.lt.s32.totalorder %v271, 2
    %vm292 = vcmp.lt.s32.totalorder %v271, 3
    %vm293 = vcmp.lt.s32.totalorder %v271, 4
    %v294 = vsel %vm290, %v274, %v277
    %v295 = vsel %vm293, %v283, 2102212464
    %v296 = vsel %vm292, %v280, %v295
    %v297 = vsel %vm291, %v294, %v296
    %v298 = vsel %vm290, %v277, %v280
    %v299 = vsel %vm293, %v286, 920167782
    %v300 = vsel %vm292, %v283, %v299
    %v301 = vsel %vm291, %v298, %v300
    %v302 = vsel %vm290, %v280, %v283
    %v303 = vsel %vm293, %v289, 1326507024
    %v304 = vsel %vm292, %v286, %v303
    %v305 = vsel %vm291, %v302, %v304
    %v306 = vshll.u32 %v266, 8
    %v307 = vmul.u32.u64.compose %v306, %v305
    %v308 = vextract.low.u32 %v307
    %v309 = vextract.high.u32 %v307
    %v310 = vmul.u32.u64.compose %v306, %v301
    %v311 = vextract.low.u32 %v310
    %v312 = vextract.high.u32 %v310
    %v313 = vmul.u32 %v306, %v297
    %v314 = vadd.s32 %v309, %v311
    %vm315 = vc.u32 %v309, %v311
    %v316 = vadd.s32 %v312, 1
    %v317 = vsel %vm315, %v316, %v312
    %v318 = vadd.s32 %v313, %v317
    %v319 = vadd.s32 %v318, 536870912
    %v320 = vshrl.u32 %v319, 30
    %v321 = vshll.u32 %v320, 30
    %v322 = vsub.s32 %v318, %v321
    %vm323 = vcmp.lt.s32.totalorder %v322, 0
    %v324 = vsub.s32 0, %v322
    %v325 = vsel %vm323, %v324, %v322
    %v326 = vclz %v325
    %v327 = vsub.s32 %v326, 2
    %vm328 = vcmp.gt.s32.totalorder 0, %v327
    %v329 = vsel %vm328, 0, %v327
    %v330 = vsub.s32 32, %v329
    %v331 = vshll.u32 %v322, %v329
    %v332 = vshrl.u32 %v314, %v330
    %v333 = vor.u32 %v331, %v332
    %v334 = vsub.s32 4294967266, %v329
    %v335 = vadd.s32 %v334, 127
    %v336 = vshll.u32 %v335, 23
    %v337 = vor.u32 4788187, %v336
    %v338 = vand.u32 2147483647, %v337
    %v340 = vcvt.s32.f32 %v333
    %v341 = vmul.f32 %v340, %v338
    %v342 = vxor.u32 %v341, 2147483648
    %v343 = vsel %vm260, %v342, %v341
    %v344 = vsub.s32 4, %v320
    %v345 = vsel %vm260, %v344, %v320
    %v346 = vsel %vm259, %v153, %v343
    %v347 = vsel %vm259, 0, %v345
    %v348 = vcosq.f32.pop %v346
    %v349 = vsinq.f32.pop %v346
    %vm350 = vweird.f32 %v153
    %v351 = vadd.s32 %v347, 3
    %v352 = vand.u32 %v351, 3
    %vm353 = vcmp.lt.s32.totalorder %v352, 2
    %vm354 = vcmp.eq.s32.totalorder %v352, 0
    %v355 = vxor.u32 %v349, 2147483648
    %v356 = vsel %vm354, %v348, %v355
    %vm357 = vcmp.eq.s32.totalorder %v352, 2
    %v358 = vxor.u32 %v348, 2147483648
    %v359 = vsel %vm357, %v358, %v349
    %v360 = vsel %vm353, %v356, %v359
    %v361 = vsel %vm350, nan, %v360
    %v362 = vmul.f32 %v257, %v257
    %v363 = vmul.f32 %v361, %v361
    %365 = vset.pattern.permute.xlu0 0
    %366 = vperm.xlu0 %365, %v146
    %v367 = vpop.permute.xlu0 %366
    %v369 = vmul.f32 %v362, %v367
    %v370 = vmul.f32 %v363, %v367
    %v371 = vadd.f32 %v132, %v369
    %v372 = vadd.f32 %v133, %v370
    %373 = vst [vmem:[#allocation2] sm:$0xff] %v371
    %vm374 = vcmask 64512
    %375 = vst.msk [vmem:[#allocation2 + $0x8] sm:$0xff] %vm374, %v372
    %v376 = vmul.f32 %v150, %v143
    %v377 = vmul.f32 %v150, %v144
    %v378 = vand.u32 2147483647, %v376
    %vm379 = vcmp.le.f32.partialorder %v378, 0.7853982
    %vm380 = vcmp.lt.s32.totalorder %v376, 0
    %v381 = vand.u32 %v376, 2139095040
    %v382 = vshrl.u32 %v381, 23
    %v383 = vsub.s32 %v382, 127
    %v384 = vand.u32 2147483647, %v376
    %v385 = vand.u32 %v384, 8388607
    %v386 = vor.u32 %v385, 8388608
    %v387 = vsub.s32 0, %v386
    %v388 = vadd.s32 %v383, 1
    %vm389 = vcmp.gt.s32.totalorder %v388, 0
    %v390 = vsel %vm389, %v388, 0
    %v391 = vshrl.u32 %v390, 5
    %v392 = vand.u32 %v390, 31
    %v393 = vsub.s32 32, %v392
    %v394 = vshrl.u32 683565275, %v393
    %v395 = vshll.u32 683565275, %v392
    %v396 = vshrl.u32 2475754826, %v393
    %v397 = vor.u32 %v395, %v396
    %v398 = vshll.u32 2475754826, %v392
    %v399 = vshrl.u32 2131351028, %v393
    %v400 = vor.u32 %v398, %v399
    %v401 = vshll.u32 2131351028, %v392
    %v402 = vshrl.u32 2102212464, %v393
    %v403 = vor.u32 %v401, %v402
    %v404 = vshll.u32 2102212464, %v392
    %v405 = vshrl.u32 920167782, %v393
    %v406 = vor.u32 %v404, %v405
    %v407 = vshll.u32 920167782, %v392
    %v408 = vshrl.u32 1326507024, %v393
    %v409 = vor.u32 %v407, %v408
    %vm410 = vcmp.lt.s32.totalorder %v391, 1
    %vm411 = vcmp.lt.s32.totalorder %v391, 2
    %vm412 = vcmp.lt.s32.totalorder %v391, 3
    %vm413 = vcmp.lt.s32.totalorder %v391, 4
    %v414 = vsel %vm410, %v394, %v397
    %v415 = vsel %vm413, %v403, 2102212464
    %v416 = vsel %vm412, %v400, %v415
    %v417 = vsel %vm411, %v414, %v416
    %v418 = vsel %vm410, %v397, %v400
    %v419 = vsel %vm413, %v406, 920167782
    %v420 = vsel %vm412, %v403, %v419
    %v421 = vsel %vm411, %v418, %v420
    %v422 = vsel %vm410, %v400, %v403
    %v423 = vsel %vm413, %v409, 1326507024
    %v424 = vsel %vm412, %v406, %v423
    %v425 = vsel %vm411, %v422, %v424
    %v426 = vshll.u32 %v386, 8
    %v427 = vmul.u32.u64.compose %v426, %v425
    %v428 = vextract.low.u32 %v427
    %v429 = vextract.high.u32 %v427
    %v430 = vmul.u32.u64.compose %v426, %v421
    %v431 = vextract.low.u32 %v430
    %v432 = vextract.high.u32 %v430
    %v433 = vmul.u32 %v426, %v417
    %v434 = vadd.s32 %v429, %v431
    %vm435 = vc.u32 %v429, %v431
    %v436 = vadd.s32 %v432, 1
    %v437 = vsel %vm435, %v436, %v432
    %v438 = vadd.s32 %v433, %v437
    %v439 = vadd.s32 %v438, 536870912
    %v440 = vshrl.u32 %v439, 30
    %v441 = vshll.u32 %v440, 30
    %v442 = vsub.s32 %v438, %v441
    %vm443 = vcmp.lt.s32.totalorder %v442, 0
    %v444 = vsub.s32 0, %v442
    %v445 = vsel %vm443, %v444, %v442
    %v446 = vclz %v445
    %v447 = vsub.s32 %v446, 2
    %vm448 = vcmp.gt.s32.totalorder 0, %v447
    %v449 = vsel %vm448, 0, %v447
    %v450 = vsub.s32 32, %v449
    %v451 = vshll.u32 %v442, %v449
    %v452 = vshrl.u32 %v434, %v450
    %v453 = vor.u32 %v451, %v452
    %v454 = vsub.s32 4294967266, %v449
    %v455 = vadd.s32 %v454, 127
    %v456 = vshll.u32 %v455, 23
    %v457 = vor.u32 4788187, %v456
    %v458 = vand.u32 2147483647, %v457
    %v460 = vcvt.s32.f32 %v453
    %v461 = vmul.f32 %v460, %v458
    %v462 = vxor.u32 %v461, 2147483648
    %v463 = vsel %vm380, %v462, %v461
    %v464 = vsub.s32 4, %v440
    %v465 = vsel %vm380, %v464, %v440
    %v466 = vsel %vm379, %v376, %v463
    %v467 = vsel %vm379, 0, %v465
    %v468 = vcosq.f32.pop %v466
    %v469 = vsinq.f32.pop %v466
    %vm470 = vweird.f32 %v376
    %v471 = vadd.s32 %v467, 3
    %v472 = vand.u32 %v471, 3
    %vm473 = vcmp.lt.s32.totalorder %v472, 2
    %vm474 = vcmp.eq.s32.totalorder %v472, 0
    %v475 = vxor.u32 %v469, 2147483648
    %v476 = vsel %vm474, %v468, %v475
    %vm477 = vcmp.eq.s32.totalorder %v472, 2
    %v478 = vxor.u32 %v468, 2147483648
    %v479 = vsel %vm477, %v478, %v469
    %v480 = vsel %vm473, %v476, %v479
    %v481 = vsel %vm470, nan, %v480
    %v482 = vand.u32 2147483647, %v377
    %vm483 = vcmp.le.f32.partialorder %v482, 0.7853982
    %vm484 = vcmp.lt.s32.totalorder %v377, 0
    %v485 = vand.u32 %v377, 2139095040
    %v486 = vshrl.u32 %v485, 23
    %v487 = vsub.s32 %v486, 127
    %v488 = vand.u32 2147483647, %v377
    %v489 = vand.u32 %v488, 8388607
    %v490 = vor.u32 %v489, 8388608
    %v491 = vsub.s32 0, %v490
    %v492 = vadd.s32 %v487, 1
    %vm493 = vcmp.gt.s32.totalorder %v492, 0
    %v494 = vsel %vm493, %v492, 0
    %v495 = vshrl.u32 %v494, 5
    %v496 = vand.u32 %v494, 31
    %v497 = vsub.s32 32, %v496
    %v498 = vshrl.u32 683565275, %v497
    %v499 = vshll.u32 683565275, %v496
    %v500 = vshrl.u32 2475754826, %v497
    %v501 = vor.u32 %v499, %v500
    %v502 = vshll.u32 2475754826, %v496
    %v503 = vshrl.u32 2131351028, %v497
    %v504 = vor.u32 %v502, %v503
    %v505 = vshll.u32 2131351028, %v496
    %v506 = vshrl.u32 2102212464, %v497
    %v507 = vor.u32 %v505, %v506
    %v508 = vshll.u32 2102212464, %v496
    %v509 = vshrl.u32 920167782, %v497
    %v510 = vor.u32 %v508, %v509
    %v511 = vshll.u32 920167782, %v496
    %v512 = vshrl.u32 1326507024, %v497
    %v513 = vor.u32 %v511, %v512
    %vm514 = vcmp.lt.s32.totalorder %v495, 1
    %vm515 = vcmp.lt.s32.totalorder %v495, 2
    %vm516 = vcmp.lt.s32.totalorder %v495, 3
    %vm517 = vcmp.lt.s32.totalorder %v495, 4
    %v518 = vsel %vm514, %v498, %v501
    %v519 = vsel %vm517, %v507, 2102212464
    %v520 = vsel %vm516, %v504, %v519
    %v521 = vsel %vm515, %v518, %v520
    %v522 = vsel %vm514, %v501, %v504
    %v523 = vsel %vm517, %v510, 920167782
    %v524 = vsel %vm516, %v507, %v523
    %v525 = vsel %vm515, %v522, %v524
    %v526 = vsel %vm514, %v504, %v507
    %v527 = vsel %vm517, %v513, 1326507024
    %v528 = vsel %vm516, %v510, %v527
    %v529 = vsel %vm515, %v526, %v528
    %v530 = vshll.u32 %v490, 8
    %v531 = vmul.u32.u64.compose %v530, %v529
    %v532 = vextract.low.u32 %v531
    %v533 = vextract.high.u32 %v531
    %v534 = vmul.u32.u64.compose %v530, %v525
    %v535 = vextract.low.u32 %v534
    %v536 = vextract.high.u32 %v534
    %v537 = vmul.u32 %v530, %v521
    %v538 = vadd.s32 %v533, %v535
    %vm539 = vc.u32 %v533, %v535
    %v540 = vadd.s32 %v536, 1
    %v541 = vsel %vm539, %v540, %v536
    %v542 = vadd.s32 %v537, %v541
    %v543 = vadd.s32 %v542, 536870912
    %v544 = vshrl.u32 %v543, 30
    %v545 = vshll.u32 %v544, 30
    %v546 = vsub.s32 %v542, %v545
    %vm547 = vcmp.lt.s32.totalorder %v546, 0
    %v548 = vsub.s32 0, %v546
    %v549 = vsel %vm547, %v548, %v546
    %v550 = vclz %v549
    %v551 = vsub.s32 %v550, 2
    %vm552 = vcmp.gt.s32.totalorder 0, %v551
    %v553 = vsel %vm552, 0, %v551
    %v554 = vsub.s32 32, %v553
    %v555 = vshll.u32 %v546, %v553
    %v556 = vshrl.u32 %v538, %v554
    %v557 = vor.u32 %v555, %v556
    %v558 = vsub.s32 4294967266, %v553
    %v559 = vadd.s32 %v558, 127
    %v560 = vshll.u32 %v559, 23
    %v561 = vor.u32 4788187, %v560
    %v562 = vand.u32 2147483647, %v561
    %v564 = vcvt.s32.f32 %v557
    %v565 = vmul.f32 %v564, %v562
    %v566 = vxor.u32 %v565, 2147483648
    %v567 = vsel %vm484, %v566, %v565
    %v568 = vsub.s32 4, %v544
    %v569 = vsel %vm484, %v568, %v544
    %v570 = vsel %vm483, %v377, %v567
    %v571 = vsel %vm483, 0, %v569
    %v572 = vcosq.f32.pop %v570
    %v573 = vsinq.f32.pop %v570
    %vm574 = vweird.f32 %v377
    %v575 = vadd.s32 %v571, 3
    %v576 = vand.u32 %v575, 3
    %vm577 = vcmp.lt.s32.totalorder %v576, 2
    %vm578 = vcmp.eq.s32.totalorder %v576, 0
    %v579 = vxor.u32 %v573, 2147483648
    %v580 = vsel %vm578, %v572, %v579
    %vm581 = vcmp.eq.s32.totalorder %v576, 2
    %v582 = vxor.u32 %v572, 2147483648
    %v583 = vsel %vm581, %v582, %v573
    %v584 = vsel %vm577, %v580, %v583
    %v585 = vsel %vm574, nan, %v584
    %v586 = vmul.f32 %v481, %v481
    %v587 = vmul.f32 %v585, %v585
    %v588 = vmul.f32 %v586, %v367
    %v589 = vmul.f32 %v587, %v367
    %v590 = vadd.f32 %v143, %v588
    %v591 = vadd.f32 %v144, %v589
    %592 = vst [vmem:[#allocation3] sm:$0xff] %v590
    %593 = vst.msk [vmem:[#allocation3 + $0x8] sm:$0xff] %vm374, %v591
    %p594 = scmp.eq.s32.totalorder 0, 0
    // Predicated region
    $region14: #{tpu_custom_call.1} parent=1 // pred_check
      %p595 = pneg %p594
    $region15: #{tpu_custom_call.1} parent=1 // pred_check_branch
      %597 = sbr.rel (%p595) target = $region17
    $region16: #{tpu_custom_call.1} parent=1 // pred_region
      %v598 = vld [vmem:[#allocation2] sm:$0xff]
      %600 = vset.pattern.permute.xlu0 2
      %601 = vperm.xlu0 %600, %v598
      %v602 = vpop.permute.xlu0 %601
      %vm604 = vcmask 15360
      %605 = vst.msk [vmem:[#allocation2] sm:$0xff] %vm604, %v602
      %vm606 = vcmask 23552
      %607 = vst.msk [vmem:[#allocation3] sm:$0xff] %vm606, %v602
      %v608 = vld [vmem:[#allocation3] sm:$0xff]
      %610 = vset.pattern.permute.xlu0 18
      %611 = vperm.xlu0 %610, %v608
      %v612 = vpop.permute.xlu0 %611
      %vm614 = vcmask 1047696
      %615 = vst.msk [vmem:[#allocation2] sm:$0xff] %vm614, %v612
      %616 = vst.msk [vmem:[#allocation2 + $0x8] sm:$0xff] %vm374, %v612
      %vm617 = vcmask 1047704
      %618 = vst.msk [vmem:[#allocation3] sm:$0xff] %vm617, %v612
      %619 = vst.msk [vmem:[#allocation3 + $0x8] sm:$0xff] %vm374, %v612
    $region17: #{tpu_custom_call.1} parent=1 // pred_fallthru
      _
    %v620 = vld [vmem:[#allocation2] sm:$0xff]
    %v621 = vmul.f32 %v620, 0.009389464
    %v622 = vadd.f32 %v621, 0.0
    %v623 = vld [vmem:[#allocation3] sm:$0xff]
    %v624 = vmul.f32 %v623, 0.0020289666
    %v625 = vadd.f32 %v622, %v624
    %v626 = vld [vmem:[#allocation2 + $0x8] sm:$0xff]
    %v627 = vmul.f32 %v620, -0.057657376
    %v628 = vmul.f32 %v626, -0.057657376
    %631 = vrot.lane.b32.xlu0 %v627, 127
    %v632 = vpop.permute.xlu0 %631
    %633 = vrot.lane.b32.xlu0 %v628, 127
    %v634 = vpop.permute.xlu0 %633
    %v635 = vsel %vm38, %v632, %v634
    %v637 = vadd.f32 %v625, %v635
    %v638 = vld [vmem:[#allocation3 + $0x8] sm:$0xff]
    %v639 = vmul.f32 %v623, -0.025543464
    %v640 = vmul.f32 %v638, -0.025543464
    %643 = vrot.lane.b32.xlu0 %v639, 127
    %v644 = vpop.permute.xlu0 %643
    %645 = vrot.lane.b32.xlu0 %v640, 127
    %v646 = vpop.permute.xlu0 %645
    %v647 = vsel %vm38, %v644, %v646
    %v649 = vadd.f32 %v637, %v647
    %v650 = vmul.f32 %v620, 0.4432098
    %v651 = vmul.f32 %v626, 0.4432098
    %654 = vrot.lane.b32.xlu0 %v650, 126
    %v655 = vpop.permute.xlu0 %654
    %656 = vrot.lane.b32.xlu0 %v651, 126
    %v657 = vpop.permute.xlu0 %656
    %v658 = vsel %vm65, %v655, %v657
    %v660 = vadd.f32 %v649, %v658
    %v661 = vmul.f32 %v623, 0.12857261
    %v662 = vmul.f32 %v638, 0.12857261
    %665 = vrot.lane.b32.xlu0 %v661, 126
    %v666 = vpop.permute.xlu0 %665
    %667 = vrot.lane.b32.xlu0 %v662, 126
    %v668 = vpop.permute.xlu0 %667
    %v669 = vsel %vm65, %v666, %v668
    %v671 = vadd.f32 %v660, %v669
    %v672 = vmul.f32 %v620, 0.12857261
    %v673 = vmul.f32 %v626, 0.12857261
    %676 = vrot.lane.b32.xlu0 %v672, 125
    %v677 = vpop.permute.xlu0 %676
    %678 = vrot.lane.b32.xlu0 %v673, 125
    %v679 = vpop.permute.xlu0 %678
    %v680 = vsel %vm88, %v677, %v679
    %v682 = vadd.f32 %v671, %v680
    %v683 = vmul.f32 %v623, 0.4432098
    %v684 = vmul.f32 %v638, 0.4432098
    %687 = vrot.lane.b32.xlu0 %v683, 125
    %v688 = vpop.permute.xlu0 %687
    %689 = vrot.lane.b32.xlu0 %v684, 125
    %v690 = vpop.permute.xlu0 %689
    %v691 = vsel %vm88, %v688, %v690
    %v693 = vadd.f32 %v682, %v691
    %v694 = vmul.f32 %v620, -0.025543464
    %v695 = vmul.f32 %v626, -0.025543464
    %698 = vrot.lane.b32.xlu0 %v694, 124
    %v699 = vpop.permute.xlu0 %698
    %700 = vrot.lane.b32.xlu0 %v695, 124
    %v701 = vpop.permute.xlu0 %700
    %v702 = vsel %vm107, %v699, %v701
    %v704 = vadd.f32 %v693, %v702
    %v705 = vmul.f32 %v623, -0.057657376
    %v706 = vmul.f32 %v638, -0.057657376
    %709 = vrot.lane.b32.xlu0 %v705, 124
    %v710 = vpop.permute.xlu0 %709
    %711 = vrot.lane.b32.xlu0 %v706, 124
    %v712 = vpop.permute.xlu0 %711
    %v713 = vsel %vm107, %v710, %v712
    %v715 = vadd.f32 %v704, %v713
    %v716 = vmul.f32 %v620, 0.0020289666
    %v717 = vmul.f32 %v626, 0.0020289666
    %720 = vrot.lane.b32.xlu0 %v716, 123
    %v721 = vpop.permute.xlu0 %720
    %722 = vrot.lane.b32.xlu0 %v717, 123
    %v723 = vpop.permute.xlu0 %722
    %v724 = vsel %vm128, %v721, %v723
    %v726 = vadd.f32 %v715, %v724
    %v727 = vmul.f32 %v623, 0.009389464
    %v728 = vmul.f32 %v638, 0.009389464
    %731 = vrot.lane.b32.xlu0 %v727, 123
    %v732 = vpop.permute.xlu0 %731
    %733 = vrot.lane.b32.xlu0 %v728, 123
    %v734 = vpop.permute.xlu0 %733
    %v735 = vsel %vm128, %v732, %v734
    %v737 = vadd.f32 %v726, %v735
    %738 = vst [vmem:[#allocation4] sm:$0xff] %v737
    // Predicated region
    $region18: #{tpu_custom_call.1} parent=1 // pred_check
      _
    $region19: #{tpu_custom_call.1} parent=1 // pred_check_branch
      %740 = sbr.rel (0) target = $region21
    $region20: #{tpu_custom_call.1} parent=1 // pred_region
      %s742 = ssub.s32 128, 128
      %743 = vsyncadd [#allocation5], %s742
      %s745 = sshll.u32 [#allocation4], 4
      %s746 = int_to_ptr.vmem [resolvable:$true] %s745
      %748 = dma.vmem_to_hbm [thread:$0]  %s746, 128, %s3, [#allocation5]
    $region21: #{tpu_custom_call.1} parent=1 // pred_fallthru
      _
    // Predicated region
    $region22: #{tpu_custom_call.1} parent=1 // pred_check
      _
    $region23: #{tpu_custom_call.1} parent=1 // pred_check_branch
      %750 = sbr.rel (0) target = $region25
    $region24: #{tpu_custom_call.1} parent=1 // pred_region
      %751 = dma.done [#allocation5], 128
    $region25: #{tpu_custom_call.1} parent=1 // pred_fallthru
      _
    %752 = vsyncpa [#allocation5], 1

</llo_original>
